<compile_context>
chip_gen: v6e
topology: v6e:2x2x1
jax: 0.10.0
libtpu: 0.0.40
codegen_flags: <defaults>
</compile_context>

<pallas_src>
import functools

import jax
import jax.numpy as jnp
from jax.experimental import pallas as pl
from jax.experimental.pallas import tpu as pltpu

_LANE = 128
_SUBLANE = 8
_EPS = 1e-5
_NEG_SLOPE = 0.01


def _round_up(x, m):
    return (x + m - 1) // m * m


_VMEM_CAP_CACHE = []


def _vmem_capacity_bytes():
    if not _VMEM_CAP_CACHE:
        try:
            _VMEM_CAP_CACHE.append(int(pltpu.get_tpu_info().vmem_capacity_bytes))
        except Exception:
            _VMEM_CAP_CACHE.append(128 << 20)
    return _VMEM_CAP_CACHE[0]


def _make_mlp_kernel(n_layers, real_out_dims):
    """refs = (x_ref, w_0, b_0, w_1, b_1, ..., o_ref).

    Weights/biases are whole-array VMEM residents; intermediate activations
    live only in vregs (bf16 between layers, f32 inside the epilogue).
    """

    def kernel(*refs):
        x_ref = refs[0]
        o_ref = refs[-1]
        wb = refs[1:-1]

        h = x_ref[...]                       # bf16 (tm, d0_pad)
        for layer in range(n_layers):
            w_ref = wb[2 * layer]            # (d_in_pad, d_out_pad) bf16
            b_ref = wb[2 * layer + 1]        # (1, d_out_pad) f32
            inv_n = 1.0 / float(real_out_dims[layer])

            # Linear on the MXU: bf16 inputs, f32 accumulation.
            acc = jnp.dot(h, w_ref[...], preferred_element_type=jnp.float32)
            acc = acc + b_ref[...]

            # LayerNorm (no affine, eps=1e-5). Padded columns of acc are
            # exactly zero (zero-padded weight columns + zero bias), so
            # unmasked sums scaled by 1/n_real are the correct statistics.
            mean = jnp.sum(acc, axis=-1, keepdims=True) * inv_n
            ex2 = jnp.sum(acc * acc, axis=-1, keepdims=True) * inv_n
            var = ex2 - mean * mean
            hn = (acc - mean) * jax.lax.rsqrt(var + _EPS)

            # LeakyReLU(0.01). Garbage in padded lanes is killed by the next
            # layer's zero padded weight rows / sliced off after the call.
            act = jnp.where(hn >= 0, hn, _NEG_SLOPE * hn)
            # TODO(synk): Dropout(p=0.1) is training-mode only; eval forward is identity.

            if layer == n_layers - 1:
                o_ref[...] = act.astype(o_ref.dtype)
            else:
                h = act.astype(jnp.bfloat16)

    return kernel


def prepare_params(params):
    """One-time preparation: pad feature dims to lane multiples, cast W to bf16.

    params: list of (W^T with shape (d_in, d_out) f32, b with shape (1, d_out) f32).
    Returns (padded, real_out_dims); `padded` is what mlp_forward consumes.
    """
    padded = []
    real_out = []
    for w, b in params:
        d_in, d_out = w.shape
        dip = _round_up(d_in, _LANE)
        dop = _round_up(d_out, _LANE)
        wp = jnp.zeros((dip, dop), jnp.bfloat16).at[:d_in, :d_out].set(
            w.astype(jnp.bfloat16))
        bp = jnp.zeros((1, dop), jnp.float32).at[:, :d_out].set(
            b.reshape(1, d_out).astype(jnp.float32))
        padded.append((wp, bp))
        real_out.append(int(d_out))
    return tuple(padded), tuple(real_out)


@functools.partial(jax.jit, static_argnames=("real_out", "block_rows"))
def mlp_forward(x, padded, *, real_out, block_rows=None):
    """x: (B, n_input) f32; padded/real_out: output of prepare_params."""
    B, n_in = x.shape
    n_layers = len(padded)
    d0p = padded[0][0].shape[0]      # padded input features
    dlp = padded[-1][0].shape[1]     # padded output features

    # Balanced, sublane-aligned batch tiling with >= 2 grid steps whenever
    # possible (keeps both v7x TensorCores busy and pipelines the x/out DMA).
    if block_rows is not None:
        tm = max(_SUBLANE, _round_up(block_rows, _SUBLANE))
    else:
        n_tiles = pl.cdiv(B, 512)
        if B > _SUBLANE:
            n_tiles = max(n_tiles, 2)
        tm = min(512, _round_up(pl.cdiv(B, n_tiles), _SUBLANE))
    b_rows = _round_up(B, tm)

    # Activation carried in bf16 (matmul inputs are bf16 anyway).
    xp = jnp.zeros((b_rows, d0p), jnp.bfloat16).at[:B, :n_in].set(
        x.astype(jnp.bfloat16))

    in_specs = [pl.BlockSpec((tm, d0p), lambda i: (i, 0))]
    inputs = [xp]
    for wp, bp in padded:
        # Whole-array VMEM residency: one copy, no per-step DMA, no
        # double-buffering.
        in_specs.append(pl.BlockSpec(memory_space=pltpu.MemorySpace.VMEM))
        in_specs.append(pl.BlockSpec(memory_space=pltpu.MemorySpace.VMEM))
        inputs += [wp, bp]

    max_feat = max([d0p] + [wp.shape[1] for wp, _ in padded])
    weight_bytes = sum(wp.size * 2 + bp.size * 4 for wp, bp in padded)
    est = (2 * tm * d0p * 2          # double-buffered bf16 x tiles
           + 2 * tm * dlp * 4        # double-buffered f32 out tiles
           + weight_bytes            # single resident copy of weights/biases
           + 4 * tm * max_feat * 4)  # f32 epilogue temporaries
    budget = (_vmem_capacity_bytes() * 4) // 5   # ~0.8x per-core VMEM capacity
    vmem_limit = int(min(budget, max(2 * est, 32 << 20)))
    # TODO(synk): if weight_bytes alone exceeds `budget` (large models on v7x's
    # 64 MiB/TC), stream weights over a d_out/layer grid axis instead of
    # pinning every layer resident.

    kernel = _make_mlp_kernel(n_layers, real_out)
    out = pl.pallas_call(
        kernel,
        out_shape=jax.ShapeDtypeStruct((b_rows, dlp), jnp.float32),
        grid=(b_rows // tm,),
        in_specs=in_specs,
        out_specs=pl.BlockSpec((tm, dlp), lambda i: (i, 0)),
        compiler_params=pltpu.CompilerParams(
            dimension_semantics=("parallel",),
            vmem_limit_bytes=vmem_limit,
        ),
    )(*inputs)

    return out[:B, :real_out[-1]]


def init_mlp_params(key, n_input, n_output, n_layers=1, n_hidden=128):
    """Deterministic parameter init matching FCLayers layer dims.
    Weights stored pre-transposed as (d_in, d_out) = W^T."""
    layers_dim = [n_input] + (n_layers - 1) * [n_hidden] + [n_output]
    params = []
    for d_in, d_out in zip(layers_dim[:-1], layers_dim[1:]):
        key, kw, kb = jax.random.split(key, 3)
        bound = 1.0 / jnp.sqrt(jnp.float32(d_in))
        w = jax.random.uniform(kw, (d_in, d_out), jnp.float32, -bound, bound)
        b = jax.random.uniform(kb, (1, d_out), jnp.float32, -bound, bound)
        params.append((w, b))
    return params


def mlp_reference(x, params):
    """Pure-JAX reference mirroring the kernel numerics (bf16 matmul, f32 rest)."""
    h = x
    for w, b in params:
        h = jnp.dot(h.astype(jnp.bfloat16), w.astype(jnp.bfloat16),
                    preferred_element_type=jnp.float32) + b.reshape(1, -1)
        mean = jnp.mean(h, axis=-1, keepdims=True)
        var = jnp.mean((h - mean) ** 2, axis=-1, keepdims=True)
        h = (h - mean) * jax.lax.rsqrt(var + _EPS)
        h = jnp.where(h >= 0, h, _NEG_SLOPE * h)
    return h


if __name__ == "__main__":
    key = jax.random.PRNGKey(0)
    k_x, k_p = jax.random.split(key)

    batch = 40
    n_input = 32
    n_hidden = 128
    n_output = 16
    n_layers = 2

    x = jax.random.normal(k_x, (batch, n_input), jnp.float32)
    params = init_mlp_params(k_p, n_input, n_output, n_layers, n_hidden)

    # One-time parameter preparation (padding + bf16 cast), hoisted out of the
    # per-call forward path.
    padded, real_out = prepare_params(params)
    padded = jax.block_until_ready(padded)

    ref = mlp_reference(x, params)

    # Default balanced tiling (>= 2 batch tiles -> both TCs busy on v7x).
    out = jax.block_until_ready(mlp_forward(x, padded, real_out=real_out))
    assert out.shape == (batch, n_output), out.shape
    err = float(jnp.max(jnp.abs(out - ref)))
    assert jnp.allclose(out, ref, atol=1e-2, rtol=1e-2), err

    # Explicit small-tile path (grid=3, zero-padded partial batch tile).
    out_tiled = jax.block_until_ready(
        mlp_forward(x, padded, real_out=real_out, block_rows=16))
    assert out_tiled.shape == (batch, n_output), out_tiled.shape
    err_t = float(jnp.max(jnp.abs(out_tiled - ref)))
    assert jnp.allclose(out_tiled, ref, atol=1e-2, rtol=1e-2), err_t

    print("KERNEL_OK")
</pallas_src>

<mosaic_0001>
module attributes {stable_mosaic.version = 11 : i64} {
  func.func @kernel(%arg0: i32, %arg1: memref<24x128xbf16, #tpu.memory_space<vmem>>, %arg2: memref<128x128xbf16, #tpu.memory_space<vmem>>, %arg3: memref<1x128xf32, #tpu.memory_space<vmem>>, %arg4: memref<128x128xbf16, #tpu.memory_space<vmem>>, %arg5: memref<1x128xf32, #tpu.memory_space<vmem>>, %arg6: memref<24x128xf32, #tpu.memory_space<vmem>>) attributes {dimension_semantics = [#tpu.dimension_semantics<parallel>], iteration_bounds = array<i64: 2>, scalar_prefetch = 0 : i64, scratch_operands = 0 : i64, tpu.core_type = #tpu.core_type<tc>, window_params = [{transform_indices = @transform_0, window_bounds = array<i64: 24, 128>}, {pipeline_mode = #tpu.pipeline_mode<synchronous>, transform_indices = @transform_1, window_bounds = array<i64: 128, 128>}, {pipeline_mode = #tpu.pipeline_mode<synchronous>, transform_indices = @transform_2, window_bounds = array<i64: 1, 128>}, {pipeline_mode = #tpu.pipeline_mode<synchronous>, transform_indices = @transform_3, window_bounds = array<i64: 128, 128>}, {pipeline_mode = #tpu.pipeline_mode<synchronous>, transform_indices = @transform_4, window_bounds = array<i64: 1, 128>}, {transform_indices = @transform_5, window_bounds = array<i64: 24, 128>}]} {
    %c0 = arith.constant 0 : index
    %c0_0 = arith.constant 0 : index
    %0 = vector.load %arg1[%c0, %c0_0] : memref<24x128xbf16, #tpu.memory_space<vmem>>, vector<24x128xbf16>
    %c0_1 = arith.constant 0 : index
    %c0_2 = arith.constant 0 : index
    %1 = vector.load %arg2[%c0_1, %c0_2] : memref<128x128xbf16, #tpu.memory_space<vmem>>, vector<128x128xbf16>
    %cst = arith.constant dense<0.000000e+00> : vector<24x128xf32>
    %2 = tpu.matmul %0, %1, %cst {dimension_numbers = #tpu.dot_dimension_numbers<[1], [0], [0], [1], [0, 0, 1, 1], [], []>} : vector<24x128xbf16>, vector<128x128xbf16>, vector<24x128xf32> -> vector<24x128xf32>
    %c0_3 = arith.constant 0 : index
    %c0_4 = arith.constant 0 : index
    %3 = vector.load %arg3[%c0_3, %c0_4] : memref<1x128xf32, #tpu.memory_space<vmem>>, vector<1x128xf32>
    %4 = vector.broadcast %3 : vector<1x128xf32> to vector<24x128xf32>
    %5 = arith.addf %2, %4 : vector<24x128xf32>
    %cst_5 = arith.constant dense<0.000000e+00> : vector<24xf32>
    %6 = vector.multi_reduction <add>, %5, %cst_5 [1] : vector<24x128xf32> to vector<24xf32>
    %7 = vector.shape_cast %6 : vector<24xf32> to vector<24x1xf32>
    %cst_6 = arith.constant 7.812500e-03 : f32
    %8 = vector.broadcast %cst_6 : f32 to vector<24x1xf32>
    %9 = arith.mulf %7, %8 : vector<24x1xf32>
    %10 = arith.mulf %5, %5 : vector<24x128xf32>
    %cst_7 = arith.constant dense<0.000000e+00> : vector<24xf32>
    %11 = vector.multi_reduction <add>, %10, %cst_7 [1] : vector<24x128xf32> to vector<24xf32>
    %12 = vector.shape_cast %11 : vector<24xf32> to vector<24x1xf32>
    %cst_8 = arith.constant 7.812500e-03 : f32
    %13 = vector.broadcast %cst_8 : f32 to vector<24x1xf32>
    %14 = arith.mulf %12, %13 : vector<24x1xf32>
    %15 = arith.mulf %9, %9 : vector<24x1xf32>
    %16 = arith.subf %14, %15 : vector<24x1xf32>
    %17 = vector.broadcast %9 : vector<24x1xf32> to vector<24x128xf32>
    %18 = arith.subf %5, %17 : vector<24x128xf32>
    %cst_9 = arith.constant 9.99999974E-6 : f32
    %19 = vector.broadcast %cst_9 : f32 to vector<24x1xf32>
    %20 = arith.addf %16, %19 : vector<24x1xf32>
    %21 = math.rsqrt %20 : vector<24x1xf32>
    %22 = vector.broadcast %21 : vector<24x1xf32> to vector<24x128xf32>
    %23 = arith.mulf %18, %22 : vector<24x128xf32>
    %cst_10 = arith.constant 0.000000e+00 : f32
    %24 = vector.broadcast %cst_10 : f32 to vector<24x128xf32>
    %25 = arith.cmpf oge, %23, %24 : vector<24x128xf32>
    %cst_11 = arith.constant 0.00999999977 : f32
    %26 = vector.broadcast %cst_11 : f32 to vector<24x128xf32>
    %27 = arith.mulf %26, %23 : vector<24x128xf32>
    %28 = arith.select %25, %23, %27 : vector<24x128xi1>, vector<24x128xf32>
    %29 = arith.truncf %28 : vector<24x128xf32> to vector<24x128xbf16>
    %c0_12 = arith.constant 0 : index
    %c0_13 = arith.constant 0 : index
    %30 = vector.load %arg4[%c0_12, %c0_13] : memref<128x128xbf16, #tpu.memory_space<vmem>>, vector<128x128xbf16>
    %cst_14 = arith.constant dense<0.000000e+00> : vector<24x128xf32>
    %31 = tpu.matmul %29, %30, %cst_14 {dimension_numbers = #tpu.dot_dimension_numbers<[1], [0], [0], [1], [0, 0, 1, 1], [], []>} : vector<24x128xbf16>, vector<128x128xbf16>, vector<24x128xf32> -> vector<24x128xf32>
    %c0_15 = arith.constant 0 : index
    %c0_16 = arith.constant 0 : index
    %32 = vector.load %arg5[%c0_15, %c0_16] : memref<1x128xf32, #tpu.memory_space<vmem>>, vector<1x128xf32>
    %33 = vector.broadcast %32 : vector<1x128xf32> to vector<24x128xf32>
    %34 = arith.addf %31, %33 : vector<24x128xf32>
    %cst_17 = arith.constant dense<0.000000e+00> : vector<24xf32>
    %35 = vector.multi_reduction <add>, %34, %cst_17 [1] : vector<24x128xf32> to vector<24xf32>
    %36 = vector.shape_cast %35 : vector<24xf32> to vector<24x1xf32>
    %cst_18 = arith.constant 6.250000e-02 : f32
    %37 = vector.broadcast %cst_18 : f32 to vector<24x1xf32>
    %38 = arith.mulf %36, %37 : vector<24x1xf32>
    %39 = arith.mulf %34, %34 : vector<24x128xf32>
    %cst_19 = arith.constant dense<0.000000e+00> : vector<24xf32>
    %40 = vector.multi_reduction <add>, %39, %cst_19 [1] : vector<24x128xf32> to vector<24xf32>
    %41 = vector.shape_cast %40 : vector<24xf32> to vector<24x1xf32>
    %cst_20 = arith.constant 6.250000e-02 : f32
    %42 = vector.broadcast %cst_20 : f32 to vector<24x1xf32>
    %43 = arith.mulf %41, %42 : vector<24x1xf32>
    %44 = arith.mulf %38, %38 : vector<24x1xf32>
    %45 = arith.subf %43, %44 : vector<24x1xf32>
    %46 = vector.broadcast %38 : vector<24x1xf32> to vector<24x128xf32>
    %47 = arith.subf %34, %46 : vector<24x128xf32>
    %cst_21 = arith.constant 9.99999974E-6 : f32
    %48 = vector.broadcast %cst_21 : f32 to vector<24x1xf32>
    %49 = arith.addf %45, %48 : vector<24x1xf32>
    %50 = math.rsqrt %49 : vector<24x1xf32>
    %51 = vector.broadcast %50 : vector<24x1xf32> to vector<24x128xf32>
    %52 = arith.mulf %47, %51 : vector<24x128xf32>
    %cst_22 = arith.constant 0.000000e+00 : f32
    %53 = vector.broadcast %cst_22 : f32 to vector<24x128xf32>
    %54 = arith.cmpf oge, %52, %53 : vector<24x128xf32>
    %cst_23 = arith.constant 0.00999999977 : f32
    %55 = vector.broadcast %cst_23 : f32 to vector<24x128xf32>
    %56 = arith.mulf %55, %52 : vector<24x128xf32>
    %57 = arith.select %54, %52, %56 : vector<24x128xi1>, vector<24x128xf32>
    %c0_24 = arith.constant 0 : index
    %c0_25 = arith.constant 0 : index
    %58 = vector.load %arg6[%c0_24, %c0_25] : memref<24x128xf32, #tpu.memory_space<vmem>>, vector<24x128xf32>
    tpu.vector_store %arg6[%c0_24, %c0_25], %57 {strides = array<i32>} : memref<24x128xf32, #tpu.memory_space<vmem>>, vector<24x128xf32>,
    return
  }
  func.func @transform_0(%arg0: i32) -> (i32, i32) {
    %c0_i32 = arith.constant 0 : i32
    %c0_i32_0 = arith.constant 0 : i32
    return %arg0, %c0_i32 : i32, i32
  }
  func.func @transform_1(%arg0: i32) -> (i32, i32) {
    %c0_i32 = arith.constant 0 : i32
    %c0_i32_0 = arith.constant 0 : i32
    %c0_i32_1 = arith.constant 0 : i32
    return %c0_i32, %c0_i32_0 : i32, i32
  }
  func.func @transform_2(%arg0: i32) -> (i32, i32) {
    %c0_i32 = arith.constant 0 : i32
    %c0_i32_0 = arith.constant 0 : i32
    %c0_i32_1 = arith.constant 0 : i32
    return %c0_i32, %c0_i32_0 : i32, i32
  }
  func.func @transform_3(%arg0: i32) -> (i32, i32) {
    %c0_i32 = arith.constant 0 : i32
    %c0_i32_0 = arith.constant 0 : i32
    %c0_i32_1 = arith.constant 0 : i32
    return %c0_i32, %c0_i32_0 : i32, i32
  }
  func.func @transform_4(%arg0: i32) -> (i32, i32) {
    %c0_i32 = arith.constant 0 : i32
    %c0_i32_0 = arith.constant 0 : i32
    %c0_i32_1 = arith.constant 0 : i32
    return %c0_i32, %c0_i32_0 : i32, i32
  }
  func.func @transform_5(%arg0: i32) -> (i32, i32) {
    %c0_i32 = arith.constant 0 : i32
    %c0_i32_0 = arith.constant 0 : i32
    return %arg0, %c0_i32 : i32, i32
  }
}

</mosaic_0001>

<llo_original>
// kernel: mlp_forward.1
$region0: #{mlp_forward.1}
  #allocation0 [shape = 'u32[]', space=smem, size = 0x4, offset = 0x4, fixed_abs, tag = 'smem constant byte address 0x4 - core index']
  #allocation1 [shape = 'u32[144,128]{1,0:T(1,128)}', space=vmem, size = 0x12000, scoped, tag = 'internal scratch']
  %s0 = inlined_call_operand.vmem [shape: bf16[48,128], index: 0, kind: input, shape index: {}]
  %s1 = inlined_call_operand.vmem [shape: bf16[128,128], index: 1, kind: input, shape index: {}]
  %s2 = inlined_call_operand.vmem [shape: f32[1,128], index: 2, kind: input, shape index: {}]
  %s3 = inlined_call_operand.vmem [shape: bf16[128,128], index: 3, kind: input, shape index: {}]
  %s4 = inlined_call_operand.vmem [shape: f32[1,128], index: 4, kind: input, shape index: {}]
  %s5 = inlined_call_operand.vmem [shape: f32[48,128], index: 5, kind: output, shape index: {}]
  %s6 = sld [smem:[#allocation0]]
  $region53: #{mlp_forward.1} parent=0
    _
  %s8 = ssub.s32 1, %s6
  %s9 = scalar_select 0, %s8, %s6
  loop: start=0, step=1, limit=4
  $region2: #{mlp_forward.1} parent=0 // loop_pre_header
    _
  $region3: #{mlp_forward.1} parent=0 // loop_header
    %s11 = sphi 0, %s15
    %p12 = scmp.ge.s32.totalorder %s11, 4
    %s21 = sphi 0, %s23
    %s24 = sphi 0, %s21
    %s25 = sphi 0, %s24
    %s41 = sphi 0, %s25
    %s45 = sphi 0, %s45
    %s47 = sphi 0, %s45
    %s48 = sphi 0, %s47
    %s62 = sphi 0, %s48
    %s66 = sphi 0, %s66
    %s68 = sphi 0, %s66
    %s69 = sphi 0, %s68
    %s83 = sphi 0, %s69
    %s87 = sphi 0, %s87
    %s89 = sphi 0, %s87
    %s90 = sphi 0, %s89
    %s104 = sphi 0, %s90
    %s108 = sphi 0, %s108
    %s110 = sphi 0, %s108
    %s111 = sphi 0, %s110
    %s125 = sphi 0, %s111
    %s131 = sphi 0, %s133
    %s134 = sphi 0, %s131
    %s135 = sphi 0, %s134
    %s151 = sphi 0, %s135
  $region4: #{mlp_forward.1} parent=0 // loop_header_branch
    %14 = sbr.rel (%p12) target = $region8
  $region5: #{mlp_forward.1} parent=0 // loop_body
    %s16 = ssub.s32 %s11, 1
    %s17 = ssub.s32 %s11, 2
    %s18 = sadd.s32 %s11, 1
    %s19 = ssub.s32 %s11, %s18
    %p20 = scmp.eq.s32.totalorder %s19, 0
    %s22 = sadd.s32 %s21, 1
    %s23 = scalar_select %p20, %s21, %s22
    %p26 = pneg %p20
    %p27 = scmp.eq.s32.totalorder %s11, 1
    %p28 = por %p26, %p27
    %p29 = scmp.ne.s32.totalorder %s21, %s24
    %p30 = scmp.eq.s32.totalorder %s11, 0
    %p31 = por %p29, %p30
    %p32 = scmp.ne.s32.totalorder %s21, %s24
    %p33 = scmp.eq.s32.totalorder %s16, 1
    %p34 = por %p32, %p33
    %p35 = scmp.ne.s32.totalorder %s24, %s25
    %p36 = scmp.eq.s32.totalorder %s16, 0
    %p37 = por %p35, %p36
    %p38 = scmp.ne.s32.totalorder %s24, %s25
    %p39 = scmp.eq.s32.totalorder %s17, 1
    %p40 = por %p38, %p39
    %p42 = scmp.ne.s32.totalorder %s25, %s41
    %p43 = scmp.eq.s32.totalorder %s17, 0
    %p44 = por %p42, %p43
    %s46 = sadd.s32 %s45, 1
    %p49 = scmp.eq.s32.totalorder %s11, 1
    %p50 = scmp.ne.s32.totalorder %s45, %s47
    %p51 = scmp.eq.s32.totalorder %s11, 0
    %p52 = por %p50, %p51
    %p53 = scmp.ne.s32.totalorder %s45, %s47
    %p54 = scmp.eq.s32.totalorder %s16, 1
    %p55 = por %p53, %p54
    %p56 = scmp.ne.s32.totalorder %s47, %s48
    %p57 = scmp.eq.s32.totalorder %s16, 0
    %p58 = por %p56, %p57
    %p59 = scmp.ne.s32.totalorder %s47, %s48
    %p60 = scmp.eq.s32.totalorder %s17, 1
    %p61 = por %p59, %p60
    %p63 = scmp.ne.s32.totalorder %s48, %s62
    %p64 = scmp.eq.s32.totalorder %s17, 0
    %p65 = por %p63, %p64
    %s67 = sadd.s32 %s66, 1
    %p70 = scmp.eq.s32.totalorder %s11, 1
    %p71 = scmp.ne.s32.totalorder %s66, %s68
    %p72 = scmp.eq.s32.totalorder %s11, 0
    %p73 = por %p71, %p72
    %p74 = scmp.ne.s32.totalorder %s66, %s68
    %p75 = scmp.eq.s32.totalorder %s16, 1
    %p76 = por %p74, %p75
    %p77 = scmp.ne.s32.totalorder %s68, %s69
    %p78 = scmp.eq.s32.totalorder %s16, 0
    %p79 = por %p77, %p78
    %p80 = scmp.ne.s32.totalorder %s68, %s69
    %p81 = scmp.eq.s32.totalorder %s17, 1
    %p82 = por %p80, %p81
    %p84 = scmp.ne.s32.totalorder %s69, %s83
    %p85 = scmp.eq.s32.totalorder %s17, 0
    %p86 = por %p84, %p85
    %s88 = sadd.s32 %s87, 1
    %p91 = scmp.eq.s32.totalorder %s11, 1
    %p92 = scmp.ne.s32.totalorder %s87, %s89
    %p93 = scmp.eq.s32.totalorder %s11, 0
    %p94 = por %p92, %p93
    %p95 = scmp.ne.s32.totalorder %s87, %s89
    %p96 = scmp.eq.s32.totalorder %s16, 1
    %p97 = por %p95, %p96
    %p98 = scmp.ne.s32.totalorder %s89, %s90
    %p99 = scmp.eq.s32.totalorder %s16, 0
    %p100 = por %p98, %p99
    %p101 = scmp.ne.s32.totalorder %s89, %s90
    %p102 = scmp.eq.s32.totalorder %s17, 1
    %p103 = por %p101, %p102
    %p105 = scmp.ne.s32.totalorder %s90, %s104
    %p106 = scmp.eq.s32.totalorder %s17, 0
    %p107 = por %p105, %p106
    %s109 = sadd.s32 %s108, 1
    %p112 = scmp.eq.s32.totalorder %s11, 1
    %p113 = scmp.ne.s32.totalorder %s108, %s110
    %p114 = scmp.eq.s32.totalorder %s11, 0
    %p115 = por %p113, %p114
    %p116 = scmp.ne.s32.totalorder %s108, %s110
    %p117 = scmp.eq.s32.totalorder %s16, 1
    %p118 = por %p116, %p117
    %p119 = scmp.ne.s32.totalorder %s110, %s111
    %p120 = scmp.eq.s32.totalorder %s16, 0
    %p121 = por %p119, %p120
    %p122 = scmp.ne.s32.totalorder %s110, %s111
    %p123 = scmp.eq.s32.totalorder %s17, 1
    %p124 = por %p122, %p123
    %p126 = scmp.ne.s32.totalorder %s111, %s125
    %p127 = scmp.eq.s32.totalorder %s17, 0
    %p128 = por %p126, %p127
    %s129 = ssub.s32 %s11, %s18
    %p130 = scmp.eq.s32.totalorder %s129, 0
    %s132 = sadd.s32 %s131, 1
    %s133 = scalar_select %p130, %s131, %s132
    %p136 = pneg %p130
    %p137 = scmp.eq.s32.totalorder %s11, 1
    %p138 = por %p136, %p137
    %p139 = scmp.ne.s32.totalorder %s131, %s134
    %p140 = scmp.eq.s32.totalorder %s11, 0
    %p141 = por %p139, %p140
    %p142 = scmp.ne.s32.totalorder %s131, %s134
    %p143 = scmp.eq.s32.totalorder %s16, 1
    %p144 = por %p142, %p143
    %p145 = scmp.ne.s32.totalorder %s134, %s135
    %p146 = scmp.eq.s32.totalorder %s16, 0
    %p147 = por %p145, %p146
    %p148 = scmp.ne.s32.totalorder %s134, %s135
    %p149 = scmp.eq.s32.totalorder %s17, 1
    %p150 = por %p148, %p149
    %p152 = scmp.ne.s32.totalorder %s135, %s151
    %p153 = scmp.eq.s32.totalorder %s17, 0
    %p154 = por %p152, %p153
    %p155 = scmp.le.s32.totalorder 1, %s11
    %p156 = scmp.lt.s32.totalorder %s11, 3
    %p157 = pnand %p155, %p156
    %p158 = pneg %p157
    // Predicated region
    $region9: #{mlp_forward.1} parent=5 // pred_check
      _
    $region10: #{mlp_forward.1} parent=5 // pred_check_branch
      %160 = sbr.rel (%p157) target = $region12
    $region11: #{mlp_forward.1} parent=5 // pred_region
      %s161 = ssub.s32 %s11, 1
      // Predicated region
      $region13: #{mlp_forward.1} parent=11 // pred_check
        %p162 = pneg %p58
      $region14: #{mlp_forward.1} parent=11 // pred_check_branch
        %164 = sbr.rel (%p162) target = $region16
      $region15: #{mlp_forward.1} parent=11 // pred_region
        _
      $region16: #{mlp_forward.1} parent=11 // pred_fallthru
        _
      // Predicated region
      $region17: #{mlp_forward.1} parent=11 // pred_check
        %p165 = pneg %p79
      $region18: #{mlp_forward.1} parent=11 // pred_check_branch
        %167 = sbr.rel (%p165) target = $region20
      $region19: #{mlp_forward.1} parent=11 // pred_region
        _
      $region20: #{mlp_forward.1} parent=11 // pred_fallthru
        _
      // Predicated region
      $region21: #{mlp_forward.1} parent=11 // pred_check
        %p168 = pneg %p100
      $region22: #{mlp_forward.1} parent=11 // pred_check_branch
        %170 = sbr.rel (%p168) target = $region24
      $region23: #{mlp_forward.1} parent=11 // pred_region
        _
      $region24: #{mlp_forward.1} parent=11 // pred_fallthru
        _
      // Predicated region
      $region25: #{mlp_forward.1} parent=11 // pred_check
        %p171 = pneg %p121
      $region26: #{mlp_forward.1} parent=11 // pred_check_branch
        %173 = sbr.rel (%p171) target = $region28
      $region27: #{mlp_forward.1} parent=11 // pred_region
        _
      $region28: #{mlp_forward.1} parent=11 // pred_fallthru
        _
    $region12: #{mlp_forward.1} parent=5 // pred_fallthru
      _
    %p174 = scmp.lt.s32.totalorder %s11, 2
    // Predicated region
    $region29: #{mlp_forward.1} parent=5 // pred_check
      %p175 = pneg %p174
    $region30: #{mlp_forward.1} parent=5 // pred_check_branch
      %177 = sbr.rel (%p175) target = $region32
    $region31: #{mlp_forward.1} parent=5 // pred_region
      // Predicated region
      $region33: #{mlp_forward.1} parent=31 // pred_check
        %p178 = pneg %p31
      $region34: #{mlp_forward.1} parent=31 // pred_check_branch
        %180 = sbr.rel (%p178) target = $region36
      $region35: #{mlp_forward.1} parent=31 // pred_region
        %s181 = smul.u32 3, %s11
        %p182 = scmp.lt.s32.totalorder %s181, 5
        %s183 = scalar_select %p182, %s181, 5
        %s184 = smul.addr %s183, 4
        %s185 = scalar_lea.vmem %s0, %s184
        %s186 = smul.u32 3, %s11
      $region36: #{mlp_forward.1} parent=31 // pred_fallthru
        _
    $region32: #{mlp_forward.1} parent=5 // pred_fallthru
      _
    %p187 = scmp.le.s32.totalorder 1, %s11
    %p188 = scmp.lt.s32.totalorder %s11, 3
    %p189 = pnand %p187, %p188
    %p190 = pneg %p189
    // Predicated region
    $region37: #{mlp_forward.1} parent=5 // pred_check
      _
    $region38: #{mlp_forward.1} parent=5 // pred_check_branch
      %192 = sbr.rel (%p189) target = $region40
    $region39: #{mlp_forward.1} parent=5 // pred_region
      %s193 = ssub.s32 %s11, 1
      %s194 = smul.u32 3, %s16
      %p195 = scmp.lt.s32.totalorder %s194, 5
      %s196 = scalar_select %p195, %s194, 5
      %s197 = smul.addr %s196, 4
      %s198 = scalar_lea.vmem %s0, %s197
      %p199 = pneg %p37
      %p200 = pneg %p34
      %p201 = pneg %p58
      %p202 = pneg %p55
      %p203 = pneg %p79
      %p204 = pneg %p76
      %p205 = pneg %p100
      %p206 = pneg %p97
      %p207 = pneg %p121
      %p208 = pneg %p118
      %p209 = pneg %p147
      %p210 = pneg %p144
      %s211 = smul.u32 3, %s16
      %p212 = scmp.lt.s32.totalorder %s211, 5
      %s213 = scalar_select %p212, %s211, 5
      %s214 = smul.addr %s213, 8
      %s215 = scalar_lea.vmem %s5, %s214
      %s216 = smul.u32 3, %s16
      %p217 = scmp.lt.s32.totalorder %s216, 5
      %s218 = scalar_select %p217, %s216, 5
      %s219 = smul.addr %s218, 4
      %s220 = scalar_lea.vmem %s0, %s219
      %s221 = smul.u32 3, %s16
      %s222 = smul.u32 3, %s16
      %p223 = scmp.lt.s32.totalorder %s222, 5
      %s224 = scalar_select %p223, %s222, 5
      %s225 = smul.addr %s224, 8
      %s226 = scalar_lea.vmem %s5, %s225
      %s227 = smul.u32 3, %s16
      %v229 = vld [vmem:[%s220] sm:$0xf]
      %v230 = vld [vmem:[%s220 + $0x4] sm:$0xf]
      %v231 = vld [vmem:[%s220 + $0x8] sm:$0xf]
      %v232 = vld [vmem:[%s1] sm:$0xf]
      %v233 = vld [vmem:[%s1 + $0x4] sm:$0xf]
      %v234 = vld [vmem:[%s1 + $0x8] sm:$0xf]
      %v235 = vld [vmem:[%s1 + $0xc] sm:$0xf]
      %v236 = vld [vmem:[%s1 + $0x10] sm:$0xf]
      %v237 = vld [vmem:[%s1 + $0x14] sm:$0xf]
      %v238 = vld [vmem:[%s1 + $0x18] sm:$0xf]
      %v239 = vld [vmem:[%s1 + $0x1c] sm:$0xf]
      %v240 = vld [vmem:[%s1 + $0x20] sm:$0xf]
      %v241 = vld [vmem:[%s1 + $0x24] sm:$0xf]
      %v242 = vld [vmem:[%s1 + $0x28] sm:$0xf]
      %v243 = vld [vmem:[%s1 + $0x2c] sm:$0xf]
      %v244 = vld [vmem:[%s1 + $0x30] sm:$0xf]
      %v245 = vld [vmem:[%s1 + $0x34] sm:$0xf]
      %v246 = vld [vmem:[%s1 + $0x38] sm:$0xf]
      %v247 = vld [vmem:[%s1 + $0x3c] sm:$0xf]
      %v248 = vld [vmem:[%s2] sm:$0x1]
      %v250 = vlaneseq
      %v251 = vshrl.u32 %v250, 7
      %v252 = vsub.s32 0, %v251
      %v253 = vrot.slane %v248, %v252
      %v258 = vunpack.c.l.b16 %v229
      %v259 = vunpack.c.l.b16 %v230
      %v260 = vunpack.c.l.b16 %v231
      %v261 = vpack.c.b16 %v259, %v258
      %v262 = vpack.c.b16 %v260, %v260
      %v281 = vunpack.c.l.b16 %v232
      %v282 = vunpack.c.l.b16 %v233
      %v283 = vunpack.c.l.b16 %v234
      %v284 = vunpack.c.l.b16 %v235
      %v285 = vunpack.c.l.b16 %v236
      %v286 = vunpack.c.l.b16 %v237
      %v287 = vunpack.c.l.b16 %v238
      %v288 = vunpack.c.l.b16 %v239
      %v289 = vunpack.c.l.b16 %v240
      %v290 = vunpack.c.l.b16 %v241
      %v291 = vunpack.c.l.b16 %v242
      %v292 = vunpack.c.l.b16 %v243
      %v293 = vunpack.c.l.b16 %v244
      %v294 = vunpack.c.l.b16 %v245
      %v295 = vunpack.c.l.b16 %v246
      %v296 = vunpack.c.l.b16 %v247
      %v297 = vpack.c.b16 %v282, %v281
      %v298 = vpack.c.b16 %v284, %v283
      %v299 = vpack.c.b16 %v286, %v285
      %v300 = vpack.c.b16 %v288, %v287
      %v301 = vpack.c.b16 %v290, %v289
      %v302 = vpack.c.b16 %v292, %v291
      %v303 = vpack.c.b16 %v294, %v293
      %v304 = vpack.c.b16 %v296, %v295
      %313 = vmatprep.subr.bf16.mxu0 0
      %314 = vmatpush1.bf16.msra.mxu0 %v304
      %315 = vmatprep.subr.bf16.mxu0 0
      %316 = vmatpush1.bf16.msra.mxu0 %v303
      %317 = vmatprep.subr.bf16.mxu0 0
      %318 = vmatpush1.bf16.msra.mxu0 %v302
      %319 = vmatprep.subr.bf16.mxu0 0
      %320 = vmatpush1.bf16.msra.mxu0 %v301
      %321 = vmatprep.subr.bf16.mxu0 0
      %322 = vmatpush1.bf16.msra.mxu0 %v300
      %323 = vmatprep.subr.bf16.mxu0 0
      %324 = vmatpush1.bf16.msra.mxu0 %v299
      %325 = vmatprep.subr.bf16.mxu0 0
      %326 = vmatpush1.bf16.msra.mxu0 %v298
      %327 = vmatprep.subr.bf16.mxu0 0
      %328 = vmatpush1.bf16.msra.mxu0 %v297
      %329 = vmatprep.subr.bf16.mxu0 0
      %330 = vmatpush2.bf16.msra.mxu0 0
      %331 = vmatprep.subr.bf16.mxu0 0
      %332 = vmatpush2.bf16.msra.mxu0 0
      %333 = vmatprep.subr.bf16.mxu0 0
      %334 = vmatpush2.bf16.msra.mxu0 0
      %335 = vmatprep.subr.bf16.mxu0 0
      %336 = vmatpush2.bf16.msra.mxu0 0
      %337 = vmatprep.subr.bf16.mxu0 0
      %338 = vmatpush2.bf16.msra.mxu0 0
      %339 = vmatprep.subr.bf16.mxu0 0
      %340 = vmatpush2.bf16.msra.mxu0 0
      %341 = vmatprep.subr.bf16.mxu0 0
      %342 = vmatpush2.bf16.msra.mxu0 0
      %343 = vmatprep.subr.bf16.mxu0 0
      %344 = vmatpush2.bf16.msra.mxu0 0
      %345 = vmatprep.mubr.bf16.mxu0 0
      %346 = vmatmul.mubr.bf16.gmra.mxu0 %v261
      %v347 = vpop.f32.mrf.mxu0
      %v348 = vadd.f32 %v253, %v347
      %v349 = vpop.f32.mrf.mxu0
      %v350 = vpop.f32.mrf.mxu0
      %v351 = vadd.f32 %v253, %v350
      %v352 = vpop.f32.mrf.mxu0
      %353 = vmatprep.mubr.bf16.mxu0 0
      %354 = vmatmul.mubr.bf16.gmra.mxu0 %v262
      %v355 = vpop.f32.mrf.mxu0
      %v356 = vadd.f32 %v253, %v355
      %v357 = vpop.f32.mrf.mxu0
      %v358 = vpop.f32.mrf.mxu0
      %v359 = vpop.f32.mrf.mxu0
      %360 = vdwg.mxu0
      %361 = vadd.xlane.f32.xlu0 %v348
      %v362 = vpop.xlane.xlu0 %361
      %363 = vadd.xlane.f32.xlu0 %v351
      %v364 = vpop.xlane.xlu0 %363
      %365 = vadd.xlane.f32.xlu0 %v356
      %v366 = vpop.xlane.xlu0 %365
      %v367 = vmul.f32 %v362, 0.0078125
      %v368 = vmul.f32 %v364, 0.0078125
      %v369 = vmul.f32 %v366, 0.0078125
      %v370 = vmul.f32 %v348, %v348
      %v371 = vmul.f32 %v351, %v351
      %v372 = vmul.f32 %v356, %v356
      %373 = vadd.xlane.f32.xlu0 %v370
      %v374 = vpop.xlane.xlu0 %373
      %375 = vadd.xlane.f32.xlu0 %v371
      %v376 = vpop.xlane.xlu0 %375
      %377 = vadd.xlane.f32.xlu0 %v372
      %v378 = vpop.xlane.xlu0 %377
      %v379 = vmul.f32 %v374, 0.0078125
      %v380 = vmul.f32 %v376, 0.0078125
      %v381 = vmul.f32 %v378, 0.0078125
      %v382 = vmul.f32 %v367, %v367
      %v383 = vmul.f32 %v368, %v368
      %v384 = vmul.f32 %v369, %v369
      %v385 = vsub.f32 %v379, %v382
      %v386 = vsub.f32 %v380, %v383
      %v387 = vsub.f32 %v381, %v384
      %v388 = vsub.f32 %v348, %v367
      %v389 = vsub.f32 %v351, %v368
      %v390 = vsub.f32 %v356, %v369
      %v391 = vadd.f32 %v385, 1e-05
      %v392 = vadd.f32 %v386, 1e-05
      %v393 = vadd.f32 %v387, 1e-05
      %v394 = vrsqrt.pop %v391
      %v395 = vrsqrt.pop %v392
      %v396 = vrsqrt.pop %v393
      %v397 = vmul.f32 %v388, %v394
      %v398 = vmul.f32 %v389, %v395
      %v399 = vmul.f32 %v390, %v396
      %vm400 = vcmp.ge.f32.partialorder %v397, 0.0
      %vm401 = vcmp.ge.f32.partialorder %v398, 0.0
      %vm402 = vcmp.ge.f32.partialorder %v399, 0.0
      %v403 = vmul.f32 %v397, 0.01
      %v404 = vmul.f32 %v398, 0.01
      %v405 = vmul.f32 %v399, 0.01
      %v406 = vsel %vm400, %v397, %v403
      %v407 = vsel %vm401, %v398, %v404
      %v408 = vsel %vm402, %v399, %v405
      %v409 = vpack.c.bf16 %v407, %v406
      %v410 = vpack.c.bf16 %v408, %v408
      %v411 = vld [vmem:[%s3] sm:$0xf]
      %v412 = vld [vmem:[%s3 + $0x4] sm:$0xf]
      %v413 = vld [vmem:[%s3 + $0x8] sm:$0xf]
      %v414 = vld [vmem:[%s3 + $0xc] sm:$0xf]
      %v415 = vld [vmem:[%s3 + $0x10] sm:$0xf]
      %v416 = vld [vmem:[%s3 + $0x14] sm:$0xf]
      %v417 = vld [vmem:[%s3 + $0x18] sm:$0xf]
      %v418 = vld [vmem:[%s3 + $0x1c] sm:$0xf]
      %v419 = vld [vmem:[%s3 + $0x20] sm:$0xf]
      %v420 = vld [vmem:[%s3 + $0x24] sm:$0xf]
      %v421 = vld [vmem:[%s3 + $0x28] sm:$0xf]
      %v422 = vld [vmem:[%s3 + $0x2c] sm:$0xf]
      %v423 = vld [vmem:[%s3 + $0x30] sm:$0xf]
      %v424 = vld [vmem:[%s3 + $0x34] sm:$0xf]
      %v425 = vld [vmem:[%s3 + $0x38] sm:$0xf]
      %v426 = vld [vmem:[%s3 + $0x3c] sm:$0xf]
      %v427 = vld [vmem:[%s4] sm:$0x1]
      %v429 = vlaneseq
      %v430 = vshrl.u32 %v429, 7
      %v431 = vsub.s32 0, %v430
      %v432 = vrot.slane %v427, %v431
      %v450 = vunpack.c.l.b16 %v411
      %v451 = vunpack.c.l.b16 %v412
      %v452 = vunpack.c.l.b16 %v413
      %v453 = vunpack.c.l.b16 %v414
      %v454 = vunpack.c.l.b16 %v415
      %v455 = vunpack.c.l.b16 %v416
      %v456 = vunpack.c.l.b16 %v417
      %v457 = vunpack.c.l.b16 %v418
      %v458 = vunpack.c.l.b16 %v419
      %v459 = vunpack.c.l.b16 %v420
      %v460 = vunpack.c.l.b16 %v421
      %v461 = vunpack.c.l.b16 %v422
      %v462 = vunpack.c.l.b16 %v423
      %v463 = vunpack.c.l.b16 %v424
      %v464 = vunpack.c.l.b16 %v425
      %v465 = vunpack.c.l.b16 %v426
      %v466 = vpack.c.b16 %v451, %v450
      %v467 = vpack.c.b16 %v453, %v452
      %v468 = vpack.c.b16 %v455, %v454
      %v469 = vpack.c.b16 %v457, %v456
      %v470 = vpack.c.b16 %v459, %v458
      %v471 = vpack.c.b16 %v461, %v460
      %v472 = vpack.c.b16 %v463, %v462
      %v473 = vpack.c.b16 %v465, %v464
      %482 = vmatprep.subr.bf16.mxu0 0
      %483 = vmatpush1.bf16.msra.mxu0 %v473
      %484 = vmatprep.subr.bf16.mxu0 0
      %485 = vmatpush1.bf16.msra.mxu0 %v472
      %486 = vmatprep.subr.bf16.mxu0 0
      %487 = vmatpush1.bf16.msra.mxu0 %v471
      %488 = vmatprep.subr.bf16.mxu0 0
      %489 = vmatpush1.bf16.msra.mxu0 %v470
      %490 = vmatprep.subr.bf16.mxu0 0
      %491 = vmatpush1.bf16.msra.mxu0 %v469
      %492 = vmatprep.subr.bf16.mxu0 0
      %493 = vmatpush1.bf16.msra.mxu0 %v468
      %494 = vmatprep.subr.bf16.mxu0 0
      %495 = vmatpush1.bf16.msra.mxu0 %v467
      %496 = vmatprep.subr.bf16.mxu0 0
      %497 = vmatpush1.bf16.msra.mxu0 %v466
      %498 = vmatprep.subr.bf16.mxu0 0
      %499 = vmatpush2.bf16.msra.mxu0 0
      %500 = vmatprep.subr.bf16.mxu0 0
      %501 = vmatpush2.bf16.msra.mxu0 0
      %502 = vmatprep.subr.bf16.mxu0 0
      %503 = vmatpush2.bf16.msra.mxu0 0
      %504 = vmatprep.subr.bf16.mxu0 0
      %505 = vmatpush2.bf16.msra.mxu0 0
      %506 = vmatprep.subr.bf16.mxu0 0
      %507 = vmatpush2.bf16.msra.mxu0 0
      %508 = vmatprep.subr.bf16.mxu0 0
      %509 = vmatpush2.bf16.msra.mxu0 0
      %510 = vmatprep.subr.bf16.mxu0 0
      %511 = vmatpush2.bf16.msra.mxu0 0
      %512 = vmatprep.subr.bf16.mxu0 0
      %513 = vmatpush2.bf16.msra.mxu0 0
      %514 = vmatprep.mubr.bf16.mxu0 0
      %515 = vmatmul.mubr.bf16.gmra.mxu0 %v409
      %v516 = vpop.f32.mrf.mxu0
      %v517 = vadd.f32 %v432, %v516
      %v518 = vpop.f32.mrf.mxu0
      %v519 = vpop.f32.mrf.mxu0
      %v520 = vadd.f32 %v432, %v519
      %v521 = vpop.f32.mrf.mxu0
      %522 = vmatprep.mubr.bf16.mxu0 0
      %523 = vmatmul.mubr.bf16.gmra.mxu0 %v410
      %v524 = vpop.f32.mrf.mxu0
      %v525 = vadd.f32 %v432, %v524
      %v526 = vpop.f32.mrf.mxu0
      %v527 = vpop.f32.mrf.mxu0
      %v528 = vpop.f32.mrf.mxu0
      %529 = vdwg.mxu0
      %530 = vadd.xlane.f32.xlu0 %v517
      %v531 = vpop.xlane.xlu0 %530
      %532 = vadd.xlane.f32.xlu0 %v520
      %v533 = vpop.xlane.xlu0 %532
      %534 = vadd.xlane.f32.xlu0 %v525
      %v535 = vpop.xlane.xlu0 %534
      %v536 = vmul.f32 %v531, 0.0625
      %v537 = vmul.f32 %v533, 0.0625
      %v538 = vmul.f32 %v535, 0.0625
      %v539 = vmul.f32 %v517, %v517
      %v540 = vmul.f32 %v520, %v520
      %v541 = vmul.f32 %v525, %v525
      %542 = vadd.xlane.f32.xlu0 %v539
      %v543 = vpop.xlane.xlu0 %542
      %544 = vadd.xlane.f32.xlu0 %v540
      %v545 = vpop.xlane.xlu0 %544
      %546 = vadd.xlane.f32.xlu0 %v541
      %v547 = vpop.xlane.xlu0 %546
      %v548 = vmul.f32 %v543, 0.0625
      %v549 = vmul.f32 %v545, 0.0625
      %v550 = vmul.f32 %v547, 0.0625
      %v551 = vmul.f32 %v536, %v536
      %v552 = vmul.f32 %v537, %v537
      %v553 = vmul.f32 %v538, %v538
      %v554 = vsub.f32 %v548, %v551
      %v555 = vsub.f32 %v549, %v552
      %v556 = vsub.f32 %v550, %v553
      %v557 = vsub.f32 %v517, %v536
      %v558 = vsub.f32 %v520, %v537
      %v559 = vsub.f32 %v525, %v538
      %v560 = vadd.f32 %v554, 1e-05
      %v561 = vadd.f32 %v555, 1e-05
      %v562 = vadd.f32 %v556, 1e-05
      %v563 = vrsqrt.pop %v560
      %v564 = vrsqrt.pop %v561
      %v565 = vrsqrt.pop %v562
      %v566 = vmul.f32 %v557, %v563
      %v567 = vmul.f32 %v558, %v564
      %v568 = vmul.f32 %v559, %v565
      %vm569 = vcmp.ge.f32.partialorder %v566, 0.0
      %vm570 = vcmp.ge.f32.partialorder %v567, 0.0
      %vm571 = vcmp.ge.f32.partialorder %v568, 0.0
      %v572 = vmul.f32 %v566, 0.01
      %v573 = vmul.f32 %v567, 0.01
      %v574 = vmul.f32 %v568, 0.01
      %v575 = vsel %vm569, %v566, %v572
      %v576 = vsel %vm570, %v567, %v573
      %v577 = vsel %vm571, %v568, %v574
      %578 = vst [vmem:[%s226] sm:$0xff] %v575
      %579 = vst [vmem:[%s226 + $0x8] sm:$0xff] %v576
      %580 = vst [vmem:[%s226 + $0x10] sm:$0xff] %v577
      %s581 = smul.u32 3, %s16
      %p582 = scmp.lt.s32.totalorder %s581, 5
      %s583 = scalar_select %p582, %s581, 5
      %s584 = smul.addr %s583, 8
      %s585 = scalar_lea.vmem %s5, %s584
      // Predicated region
      $region41: #{mlp_forward.1} parent=39 // pred_check
        %p586 = pneg %p144
      $region42: #{mlp_forward.1} parent=39 // pred_check_branch
        %588 = sbr.rel (%p586) target = $region44
      $region43: #{mlp_forward.1} parent=39 // pred_region
        %s589 = smul.u32 3, %s16
      $region44: #{mlp_forward.1} parent=39 // pred_fallthru
        _
    $region40: #{mlp_forward.1} parent=5 // pred_fallthru
      _
    %p590 = scmp.le.s32.totalorder 2, %s11
    // Predicated region
    $region45: #{mlp_forward.1} parent=5 // pred_check
      %p591 = pneg %p590
    $region46: #{mlp_forward.1} parent=5 // pred_check_branch
      %593 = sbr.rel (%p591) target = $region48
    $region47: #{mlp_forward.1} parent=5 // pred_region
      %s594 = ssub.s32 %s11, 2
      // Predicated region
      $region49: #{mlp_forward.1} parent=47 // pred_check
        %p595 = pneg %p150
      $region50: #{mlp_forward.1} parent=47 // pred_check_branch
        %597 = sbr.rel (%p595) target = $region52
      $region51: #{mlp_forward.1} parent=47 // pred_region
        %s598 = smul.u32 3, %s17
        %p599 = scmp.lt.s32.totalorder %s598, 5
        %s600 = scalar_select %p599, %s598, 5
        %s601 = smul.addr %s600, 8
        %s602 = scalar_lea.vmem %s5, %s601
      $region52: #{mlp_forward.1} parent=47 // pred_fallthru
        _
    $region48: #{mlp_forward.1} parent=5 // pred_fallthru
      _
  $region6: #{mlp_forward.1} parent=0 // loop_footer
    %s15 = sadd.s32 1, %s11
  $region7: #{mlp_forward.1} parent=0 // loop_footer_branch
    %10 = sbr.rel target = $region3
  $region8: #{mlp_forward.1} parent=0 // loop_exit
    _

</llo_original>
